<compile_context>
chip_gen: v5e
topology: v5e:2x2
jax: 0.10.0
libtpu: 0.0.40
codegen_flags: <defaults>
</compile_context>

<pallas_src>
import jax
import jax.numpy as jnp
from jax.experimental import pallas as pl
from jax.experimental.pallas import tpu as pltpu

EPS = 1e-5                       # torch BatchNorm3d default eps
VMEM_LIMIT = 48 * 1024 * 1024    # keep under v7x's 64 MiB physical VMEM


# ----------------------------- helpers -----------------------------

def _pick_row_tile(ms, cap=2048):
    # Largest lane-dense (multiple-of-128) tile that divides the row count.
    t = (min(cap, ms) // 128) * 128
    while t >= 128:
        if ms % t == 0:
            return t
        t -= 128
    return ms


def _fold_bn_from_moments(mean, var, gamma, beta):
    scale = gamma.reshape(-1, 1) * jax.lax.rsqrt(var.reshape(-1, 1) + EPS)
    shift = beta.reshape(-1, 1) - mean.reshape(-1, 1) * scale
    return scale.astype(jnp.float32), shift.astype(jnp.float32)


def _fold_bn(x_ncm, gamma, beta):
    # Training-mode (biased) per-channel batch stats folded into scale/shift.
    # Plain JAX: it's a trivial (C,) reduction over the kernel input.
    mean = jnp.mean(x_ncm, axis=(0, 2))
    var = jnp.mean(jnp.square(x_ncm - mean[None, :, None]), axis=(0, 2))
    return _fold_bn_from_moments(mean, var, gamma, beta)


def _tap_boundary_mask(hh, ww, H, W, oh, ow):
    # Valid-lane mask for a conv tap with (h, w) offsets.  D-axis out-of-bounds
    # reads fall outside the flat array and are handled by the lane zero-pad.
    mask = None
    if oh < 0:
        mask = hh >= -oh
    elif oh > 0:
        mask = hh < H - oh
    if ow < 0:
        mw = ww >= -ow
        mask = mw if mask is None else (mask & mw)
    elif ow > 0:
        mw = ww < W - ow
        mask = mw if mask is None else (mask & mw)
    return mask


# ----------------------------- Pallas kernels -----------------------------

def _bn_relu_bottleconv_kernel(x_ref, s1_ref, t1_ref, wb_ref,
                               z_ref, psum_ref, psq_ref):
    # x: (C, TM) f32, s1/t1: (C, 1) folded BN1 scale/shift, wb: (CMID, C) bf16.
    # BN1 (precomputed stats) + ReLU in f32, 1x1x1 conv as a bf16 MXU matmul.
    y = jnp.maximum(x_ref[...] * s1_ref[...] + t1_ref[...], 0.0)
    z = jnp.dot(wb_ref[...], y.astype(jnp.bfloat16),
                preferred_element_type=jnp.float32)
    z_ref[...] = z.astype(z_ref.dtype)                 # bf16 HBM intermediate
    # Per-tile BN2 partial statistics, computed from the f32 accumulator so the
    # folded BN2 moments are exact; combined by a tiny plain-JAX reduce outside.
    psum_ref[...] = jnp.sum(z, axis=1, keepdims=True)
    psq_ref[...] = jnp.sum(z * z, axis=1, keepdims=True)


def _make_bn_relu_ssb_stb_kernel(D, H, W, CMID, G):
    HW, MS = H * W, D * H * W
    PAD = HW + W          # max |flat shift| of the (3,3,1) taps

    def kernel(z_ref, s2_ref, t2_ref, wssb_ref, bssb_ref, wstb_ref, bstb_ref,
               o_ref):
        # BN2 (folded batch stats) + ReLU in f32 (z is bf16, promotes to f32),
        # then cast to bf16 for the MXU.
        y = jnp.maximum(z_ref[...] * s2_ref[...] + t2_ref[...], 0.0)
        y = y.astype(jnp.bfloat16)                         # (CMID, MS)

        lane = jax.lax.broadcasted_iota(jnp.int32, (1, MS), 1)
        hh = (lane // W) % H
        ww = lane % W

        # convSSBottle (3,3,1) 'same': 9 shifted-slice matmuls on the tile.
        zero = jnp.zeros((CMID, PAD), jnp.bfloat16)
        yp = jnp.concatenate([zero, y, zero], axis=1)      # flat zero pad (D edges)
        wssb = wssb_ref[...]                               # (9, G, CMID) bf16
        acc = jnp.zeros((G, MS), jnp.float32)
        for kd in range(3):
            for kh in range(3):
                od, oh = kd - 1, kh - 1
                shift = od * HW + oh * W
                tap = yp[:, PAD + shift: PAD + shift + MS]
                mask = _tap_boundary_mask(hh, ww, H, W, oh, 0)
                if mask is not None:
                    tap = jnp.where(mask, tap, jnp.zeros_like(tap))
                acc = acc + jnp.dot(wssb[kd * 3 + kh], tap,
                                    preferred_element_type=jnp.float32)
        v = (acc + bssb_ref[...]).astype(jnp.bfloat16)     # (G, MS)

        # convSTBottle (1,1,3) 'same': 3 shifted-slice matmuls.
        zero1 = jnp.zeros((G, 1), jnp.bfloat16)
        vp = jnp.concatenate([zero1, v, zero1], axis=1)
        wstb = wstb_ref[...]                               # (3, G, G) bf16
        acc2 = jnp.zeros((G, MS), jnp.float32)
        for kw in range(3):
            ow = kw - 1
            tap = vp[:, 1 + ow: 1 + ow + MS]
            mask = _tap_boundary_mask(hh, ww, H, W, 0, ow)
            if mask is not None:
                tap = jnp.where(mask, tap, jnp.zeros_like(tap))
            acc2 = acc2 + jnp.dot(wstb[kw], tap,
                                  preferred_element_type=jnp.float32)
        o_ref[...] = acc2 + bstb_ref[...]

    return kernel


def _make_bn_relu_sst_kernel(D, H, W, C, G):
    HW, MS = H * W, D * H * W
    PAD = HW + W + 1      # max |flat shift| of the (3,3,3) taps

    def kernel(x_ref, s1_ref, t1_ref, wsst_ref, o_ref):
        y = jnp.maximum(x_ref[...] * s1_ref[...] + t1_ref[...], 0.0)
        y = y.astype(jnp.bfloat16)                         # (C, MS)
        lane = jax.lax.broadcasted_iota(jnp.int32, (1, MS), 1)
        hh = (lane // W) % H
        ww = lane % W
        zero = jnp.zeros((C, PAD), jnp.bfloat16)
        yp = jnp.concatenate([zero, y, zero], axis=1)
        wsst = wsst_ref[...]                               # (27, G, C) bf16
        acc = jnp.zeros((G, MS), jnp.float32)
        for kd in range(3):
            for kh in range(3):
                for kw in range(3):
                    od, oh, ow = kd - 1, kh - 1, kw - 1
                    shift = od * HW + oh * W + ow
                    tap = yp[:, PAD + shift: PAD + shift + MS]
                    mask = _tap_boundary_mask(hh, ww, H, W, oh, ow)
                    if mask is not None:
                        tap = jnp.where(mask, tap, jnp.zeros_like(tap))
                    acc = acc + jnp.dot(wsst[(kd * 3 + kh) * 3 + kw], tap,
                                        preferred_element_type=jnp.float32)
        o_ref[...] = acc

    return kernel


# ----------------------------- ConvBlock forward -----------------------------

def init_params(key, in_channels, growth_rate, bn_size):
    cmid = bn_size * growth_rate
    keys = iter(jax.random.split(key, 16))

    def rnd(shape, scale=0.1):
        return scale * jax.random.normal(next(keys), shape, jnp.float32)

    return {
        # BatchNorm3d(in_channels)
        "bn1_gamma": 1.0 + rnd((1, in_channels)),
        "bn1_beta": rnd((1, in_channels)),
        # bottleConv: Conv3d(in_channels, cmid, (1,1,1))
        "bottle_w": rnd((cmid, in_channels, 1, 1, 1)),
        "bottle_b": rnd((1, cmid)),
        # batchNormBottle: BatchNorm3d(cmid)
        "bn2_gamma": 1.0 + rnd((1, cmid)),
        "bn2_beta": rnd((1, cmid)),
        # convSSBottle: Conv3d(cmid, growth_rate, (3,3,1), padding='same')
        "convSSB_w": rnd((growth_rate, cmid, 3, 3, 1)),
        "convSSB_b": rnd((1, growth_rate)),
        # convSTBottle: Conv3d(growth_rate, growth_rate, (1,1,3), padding='same')
        "convSTB_w": rnd((growth_rate, growth_rate, 1, 1, 3)),
        "convSTB_b": rnd((1, growth_rate)),
        # convSST: Conv3d(in_channels, growth_rate, (3,3,3), padding='same', bias=False)
        "convSST_w": rnd((growth_rate, in_channels, 3, 3, 3)),
        # TODO(synk): self.dropOut is stored but never applied in forward(), so no dropout.
    }


def conv_block_forward(params, x, bottleneck=True):
    # x: (N, C, D, H, W) — PyTorch NCDHW; spatial flattens straight onto lanes.
    N, C, D, H, W = x.shape
    MS = D * H * W
    xf = x.reshape(N, C, MS).astype(jnp.float32)

    # BN1 batch statistics folded into per-channel scale/shift (f32).
    scale1, shift1 = _fold_bn(xf, params["bn1_gamma"], params["bn1_beta"])

    if bottleneck:
        CMID = params["bottle_w"].shape[0]
        G = params["convSSB_w"].shape[0]

        # ---- stage 1: BN1 + ReLU + 1x1x1 bottleneck conv, row-tiled ----
        # NOTE: bottle_b is intentionally NOT applied — a constant per-channel
        # bias right before a batch-stat BatchNorm cancels exactly.
        wb = params["bottle_w"].reshape(CMID, C).astype(jnp.bfloat16)
        TM = _pick_row_tile(MS)
        NM = MS // TM
        cost1 = pl.CostEstimate(
            flops=2 * N * MS * C * CMID + 3 * N * MS * C + 4 * N * MS * CMID,
            transcendentals=0,
            bytes_accessed=int(4 * N * MS * C + 2 * N * MS * CMID + 2 * CMID * C),
        )
        z, psum, psq = pl.pallas_call(
            _bn_relu_bottleconv_kernel,
            out_shape=(jax.ShapeDtypeStruct((N, CMID, MS), jnp.bfloat16),
                       jax.ShapeDtypeStruct((N, NM, CMID, 1), jnp.float32),
                       jax.ShapeDtypeStruct((N, NM, CMID, 1), jnp.float32)),
            grid=(N, NM),
            in_specs=[
                pl.BlockSpec((None, C, TM), lambda n, m: (n, 0, m)),
                pl.BlockSpec((C, 1), lambda n, m: (0, 0)),
                pl.BlockSpec((C, 1), lambda n, m: (0, 0)),
                pl.BlockSpec((CMID, C), lambda n, m: (0, 0)),
            ],
            out_specs=[
                pl.BlockSpec((None, CMID, TM), lambda n, m: (n, 0, m)),
                pl.BlockSpec((None, None, CMID, 1), lambda n, m: (n, m, 0, 0)),
                pl.BlockSpec((None, None, CMID, 1), lambda n, m: (n, m, 0, 0)),
            ],
            compiler_params=pltpu.CompilerParams(
                dimension_semantics=("parallel", "parallel"),
                vmem_limit_bytes=VMEM_LIMIT),
            cost_estimate=cost1,
        )(xf, scale1, shift1, wb)

        # ---- BN2 stats from the fused per-tile partial moments (tiny reduce) ----
        cnt = float(N * MS)
        mean2 = jnp.sum(psum, axis=(0, 1, 3)) / cnt               # (CMID,)
        var2 = jnp.maximum(jnp.sum(psq, axis=(0, 1, 3)) / cnt - mean2 * mean2, 0.0)
        scale2, shift2 = _fold_bn_from_moments(
            mean2, var2, params["bn2_gamma"], params["bn2_beta"])

        # ---- stage 2: BN2 + ReLU + convSSBottle + convSTBottle, fused ----
        wssb = jnp.transpose(params["convSSB_w"], (2, 3, 4, 0, 1)) \
                  .reshape(9, G, CMID).astype(jnp.bfloat16)
        bssb = params["convSSB_b"].reshape(G, 1).astype(jnp.float32)
        wstb = jnp.transpose(params["convSTB_w"], (2, 3, 4, 0, 1)) \
                  .reshape(3, G, G).astype(jnp.bfloat16)
        bstb = params["convSTB_b"].reshape(G, 1).astype(jnp.float32)
        kernel2 = _make_bn_relu_ssb_stb_kernel(D, H, W, CMID, G)
        cost2 = pl.CostEstimate(
            flops=2 * N * MS * (9 * CMID * G + 3 * G * G),
            transcendentals=0,
            bytes_accessed=int(2 * N * MS * CMID + 4 * N * MS * G),
        )
        # TODO(synk): for very large D*H*W the per-batch (CMID, MS) tile should be
        # split along D with a 1-deep halo (manual DMA); whole-volume blocks keep
        # all taps on one resident tile and fit easily at these shapes.
        out = pl.pallas_call(
            kernel2,
            out_shape=jax.ShapeDtypeStruct((N, G, MS), jnp.float32),
            grid=(N,),
            in_specs=[
                pl.BlockSpec((None, CMID, MS), lambda n: (n, 0, 0)),
                pl.BlockSpec((CMID, 1), lambda n: (0, 0)),
                pl.BlockSpec((CMID, 1), lambda n: (0, 0)),
                pl.BlockSpec((9, G, CMID), lambda n: (0, 0, 0)),
                pl.BlockSpec((G, 1), lambda n: (0, 0)),
                pl.BlockSpec((3, G, G), lambda n: (0, 0, 0)),
                pl.BlockSpec((G, 1), lambda n: (0, 0)),
            ],
            out_specs=pl.BlockSpec((None, G, MS), lambda n: (n, 0, 0)),
            compiler_params=pltpu.CompilerParams(
                dimension_semantics=("parallel",),
                vmem_limit_bytes=VMEM_LIMIT),
            cost_estimate=cost2,
        )(z, scale2, shift2, wssb, bssb, wstb, bstb)
    else:
        G = params["convSST_w"].shape[0]
        wsst = jnp.transpose(params["convSST_w"], (2, 3, 4, 0, 1)) \
                  .reshape(27, G, C).astype(jnp.bfloat16)
        kernel = _make_bn_relu_sst_kernel(D, H, W, C, G)
        cost = pl.CostEstimate(
            flops=2 * N * MS * 27 * C * G + 3 * N * MS * C,
            transcendentals=0,
            bytes_accessed=int(4 * N * MS * (C + G)),
        )
        out = pl.pallas_call(
            kernel,
            out_shape=jax.ShapeDtypeStruct((N, G, MS), jnp.float32),
            grid=(N,),
            in_specs=[
                pl.BlockSpec((None, C, MS), lambda n: (n, 0, 0)),
                pl.BlockSpec((C, 1), lambda n: (0, 0)),
                pl.BlockSpec((C, 1), lambda n: (0, 0)),
                pl.BlockSpec((27, G, C), lambda n: (0, 0, 0)),
            ],
            out_specs=pl.BlockSpec((None, G, MS), lambda n: (n, 0, 0)),
            compiler_params=pltpu.CompilerParams(
                dimension_semantics=("parallel",),
                vmem_limit_bytes=VMEM_LIMIT),
            cost_estimate=cost,
        )(xf, scale1, shift1, wsst)

    # (N, G, D*H*W) -> NCDHW, pure reshape, no transpose needed.
    return out.reshape(N, -1, D, H, W)


# ----------------------------- pure-JAX reference -----------------------------

def reference_forward(params, x, bottleneck=True):
    def bn(x, gamma, beta):
        mean = jnp.mean(x, axis=(0, 2, 3, 4), keepdims=True)
        var = jnp.mean((x - mean) ** 2, axis=(0, 2, 3, 4), keepdims=True)
        g = gamma.reshape(1, -1, 1, 1, 1)
        b = beta.reshape(1, -1, 1, 1, 1)
        return (x - mean) * jax.lax.rsqrt(var + EPS) * g + b

    def conv(x, w, b=None):
        y = jax.lax.conv_general_dilated(
            x, w, (1, 1, 1), "SAME",
            dimension_numbers=("NCDHW", "OIDHW", "NCDHW"))
        if b is not None:
            y = y + b.reshape(1, -1, 1, 1, 1)
        return y

    y = jnp.maximum(bn(x, params["bn1_gamma"], params["bn1_beta"]), 0.0)
    if bottleneck:
        y = conv(y, params["bottle_w"], params["bottle_b"])
        y = jnp.maximum(bn(y, params["bn2_gamma"], params["bn2_beta"]), 0.0)
        y = conv(y, params["convSSB_w"], params["convSSB_b"])
        y = conv(y, params["convSTB_w"], params["convSTB_b"])
    else:
        y = conv(y, params["convSST_w"])
    return y


# ----------------------------- main -----------------------------

if __name__ == "__main__":
    key = jax.random.PRNGKey(0)
    kx, kp = jax.random.split(key)

    in_channels, growth_rate, bn_size = 4, 8, 4
    N, D, H, W = 2, 8, 16, 8   # small NCDHW input: (2, 4, 8, 16, 8); D*H*W = 1024

    x = jax.random.normal(kx, (N, in_channels, D, H, W), jnp.float32)
    params = init_params(kp, in_channels, growth_rate, bn_size)

    # bottleneck=True path (bottleConv -> BN -> ReLU -> convSSBottle -> convSTBottle)
    out = conv_block_forward(params, x, bottleneck=True)
    out = jax.block_until_ready(out)
    assert out.shape == (N, growth_rate, D, H, W), out.shape

    # bottleneck=False path (single 3x3x3 convSST, no bias)
    out_nb = conv_block_forward(params, x, bottleneck=False)
    out_nb = jax.block_until_ready(out_nb)
    assert out_nb.shape == (N, growth_rate, D, H, W), out_nb.shape

    # sanity check vs pure-JAX f32 reference (tolerance covers bf16 MXU operands
    # and the bf16 z intermediate)
    ref = reference_forward(params, x, bottleneck=True)
    ref_nb = reference_forward(params, x, bottleneck=False)
    assert jnp.allclose(out, ref, atol=5e-2, rtol=5e-2), \
        float(jnp.max(jnp.abs(out - ref)))
    assert jnp.allclose(out_nb, ref_nb, atol=5e-2, rtol=5e-2), \
        float(jnp.max(jnp.abs(out_nb - ref_nb)))

    print("KERNEL_OK")
</pallas_src>

<mosaic_0001>
module attributes {stable_mosaic.version = 11 : i64} {
  func.func @_bn_relu_bottleconv_kernel(%arg0: i32, %arg1: i32, %arg2: memref<1x4x1024xf32, #tpu.memory_space<vmem>>, %arg3: memref<4x1xf32, #tpu.memory_space<vmem>>, %arg4: memref<4x1xf32, #tpu.memory_space<vmem>>, %arg5: memref<32x4xbf16, #tpu.memory_space<vmem>>, %arg6: memref<1x32x1024xbf16, #tpu.memory_space<vmem>>, %arg7: memref<1x1x32x1xf32, #tpu.memory_space<vmem>>, %arg8: memref<1x1x32x1xf32, #tpu.memory_space<vmem>>) attributes {dimension_semantics = [#tpu.dimension_semantics<parallel>, #tpu.dimension_semantics<parallel>], iteration_bounds = array<i64: 2, 1>, scalar_prefetch = 0 : i64, scratch_operands = 0 : i64, tpu.core_type = #tpu.core_type<tc>, window_params = [{transform_indices = @transform_0, window_bounds = array<i64: 1, 4, 1024>}, {pipeline_mode = #tpu.pipeline_mode<synchronous>, transform_indices = @transform_1, window_bounds = array<i64: 4, 1>}, {pipeline_mode = #tpu.pipeline_mode<synchronous>, transform_indices = @transform_2, window_bounds = array<i64: 4, 1>}, {pipeline_mode = #tpu.pipeline_mode<synchronous>, transform_indices = @transform_3, window_bounds = array<i64: 32, 4>}, {transform_indices = @transform_4, window_bounds = array<i64: 1, 32, 1024>}, {transform_indices = @transform_5, window_bounds = array<i64: 1, 1, 32, 1>}, {transform_indices = @transform_6, window_bounds = array<i64: 1, 1, 32, 1>}]} {
    %c0 = arith.constant 0 : index
    %c0_0 = arith.constant 0 : index
    %c0_1 = arith.constant 0 : index
    %0 = vector.load %arg2[%c0, %c0_0, %c0_1] : memref<1x4x1024xf32, #tpu.memory_space<vmem>>, vector<1x4x1024xf32>
    %1 = vector.shape_cast %0 : vector<1x4x1024xf32> to vector<4x1024xf32>
    %c0_2 = arith.constant 0 : index
    %c0_3 = arith.constant 0 : index
    %2 = vector.load %arg3[%c0_2, %c0_3] : memref<4x1xf32, #tpu.memory_space<vmem>>, vector<4x1xf32>
    %3 = vector.broadcast %2 : vector<4x1xf32> to vector<4x1024xf32>
    %4 = arith.mulf %1, %3 : vector<4x1024xf32>
    %c0_4 = arith.constant 0 : index
    %c0_5 = arith.constant 0 : index
    %5 = vector.load %arg4[%c0_4, %c0_5] : memref<4x1xf32, #tpu.memory_space<vmem>>, vector<4x1xf32>
    %6 = vector.broadcast %5 : vector<4x1xf32> to vector<4x1024xf32>
    %7 = arith.addf %4, %6 : vector<4x1024xf32>
    %cst = arith.constant 0.000000e+00 : f32
    %8 = vector.broadcast %cst : f32 to vector<4x1024xf32>
    %9 = arith.maximumf %7, %8 : vector<4x1024xf32>
    %c0_6 = arith.constant 0 : index
    %c0_7 = arith.constant 0 : index
    %10 = vector.load %arg5[%c0_6, %c0_7] : memref<32x4xbf16, #tpu.memory_space<vmem>>, vector<32x4xbf16>
    %11 = arith.truncf %9 : vector<4x1024xf32> to vector<4x1024xbf16>
    %cst_8 = arith.constant dense<0.000000e+00> : vector<32x1024xf32>
    %12 = tpu.matmul %10, %11, %cst_8 {dimension_numbers = #tpu.dot_dimension_numbers<[1], [0], [0], [1], [0, 0, 1, 1], [], []>} : vector<32x4xbf16>, vector<4x1024xbf16>, vector<32x1024xf32> -> vector<32x1024xf32>
    %13 = arith.truncf %12 : vector<32x1024xf32> to vector<32x1024xbf16>
    %c0_9 = arith.constant 0 : index
    %c0_10 = arith.constant 0 : index
    %c0_11 = arith.constant 0 : index
    %14 = vector.load %arg6[%c0_9, %c0_10, %c0_11] : memref<1x32x1024xbf16, #tpu.memory_space<vmem>>, vector<1x32x1024xbf16>
    %15 = vector.shape_cast %14 : vector<1x32x1024xbf16> to vector<32x1024xbf16>
    %16 = vector.shape_cast %13 : vector<32x1024xbf16> to vector<1x32x1024xbf16>
    tpu.vector_store %arg6[%c0_9, %c0_10, %c0_11], %16 {strides = array<i32>} : memref<1x32x1024xbf16, #tpu.memory_space<vmem>>, vector<1x32x1024xbf16>,
    %cst_12 = arith.constant dense<0.000000e+00> : vector<32xf32>
    %17 = vector.multi_reduction <add>, %12, %cst_12 [1] : vector<32x1024xf32> to vector<32xf32>
    %18 = vector.shape_cast %17 : vector<32xf32> to vector<32x1xf32>
    %c0_13 = arith.constant 0 : index
    %c0_14 = arith.constant 0 : index
    %c0_15 = arith.constant 0 : index
    %c0_16 = arith.constant 0 : index
    %19 = vector.load %arg7[%c0_13, %c0_14, %c0_15, %c0_16] : memref<1x1x32x1xf32, #tpu.memory_space<vmem>>, vector<1x1x32x1xf32>
    %20 = vector.shape_cast %19 : vector<1x1x32x1xf32> to vector<32x1xf32>
    %21 = vector.shape_cast %18 : vector<32x1xf32> to vector<1x1x32x1xf32>
    tpu.vector_store %arg7[%c0_13, %c0_14, %c0_15, %c0_16], %21 {strides = array<i32>} : memref<1x1x32x1xf32, #tpu.memory_space<vmem>>, vector<1x1x32x1xf32>,
    %22 = arith.mulf %12, %12 : vector<32x1024xf32>
    %cst_17 = arith.constant dense<0.000000e+00> : vector<32xf32>
    %23 = vector.multi_reduction <add>, %22, %cst_17 [1] : vector<32x1024xf32> to vector<32xf32>
    %24 = vector.shape_cast %23 : vector<32xf32> to vector<32x1xf32>
    %c0_18 = arith.constant 0 : index
    %c0_19 = arith.constant 0 : index
    %c0_20 = arith.constant 0 : index
    %c0_21 = arith.constant 0 : index
    %25 = vector.load %arg8[%c0_18, %c0_19, %c0_20, %c0_21] : memref<1x1x32x1xf32, #tpu.memory_space<vmem>>, vector<1x1x32x1xf32>
    %26 = vector.shape_cast %25 : vector<1x1x32x1xf32> to vector<32x1xf32>
    %27 = vector.shape_cast %24 : vector<32x1xf32> to vector<1x1x32x1xf32>
    tpu.vector_store %arg8[%c0_18, %c0_19, %c0_20, %c0_21], %27 {strides = array<i32>} : memref<1x1x32x1xf32, #tpu.memory_space<vmem>>, vector<1x1x32x1xf32>,
    return
  }
  func.func @transform_0(%arg0: i32, %arg1: i32) -> (i32, i32, i32) {
    %c0_i32 = arith.constant 0 : i32
    %c0_i32_0 = arith.constant 0 : i32
    return %arg0, %c0_i32, %arg1 : i32, i32, i32
  }
  func.func @transform_1(%arg0: i32, %arg1: i32) -> (i32, i32) {
    %c0_i32 = arith.constant 0 : i32
    %c0_i32_0 = arith.constant 0 : i32
    %c0_i32_1 = arith.constant 0 : i32
    return %c0_i32, %c0_i32_0 : i32, i32
  }
  func.func @transform_2(%arg0: i32, %arg1: i32) -> (i32, i32) {
    %c0_i32 = arith.constant 0 : i32
    %c0_i32_0 = arith.constant 0 : i32
    %c0_i32_1 = arith.constant 0 : i32
    return %c0_i32, %c0_i32_0 : i32, i32
  }
  func.func @transform_3(%arg0: i32, %arg1: i32) -> (i32, i32) {
    %c0_i32 = arith.constant 0 : i32
    %c0_i32_0 = arith.constant 0 : i32
    %c0_i32_1 = arith.constant 0 : i32
    return %c0_i32, %c0_i32_0 : i32, i32
  }
  func.func @transform_4(%arg0: i32, %arg1: i32) -> (i32, i32, i32) {
    %c0_i32 = arith.constant 0 : i32
    %c0_i32_0 = arith.constant 0 : i32
    return %arg0, %c0_i32, %arg1 : i32, i32, i32
  }
  func.func @transform_5(%arg0: i32, %arg1: i32) -> (i32, i32, i32, i32) {
    %c0_i32 = arith.constant 0 : i32
    %c0_i32_0 = arith.constant 0 : i32
    %c0_i32_1 = arith.constant 0 : i32
    return %arg0, %arg1, %c0_i32, %c0_i32_0 : i32, i32, i32, i32
  }
  func.func @transform_6(%arg0: i32, %arg1: i32) -> (i32, i32, i32, i32) {
    %c0_i32 = arith.constant 0 : i32
    %c0_i32_0 = arith.constant 0 : i32
    %c0_i32_1 = arith.constant 0 : i32
    return %arg0, %arg1, %c0_i32, %c0_i32_0 : i32, i32, i32, i32
  }
}

</mosaic_0001>

<llo_original>
// kernel: tpu_custom_call.1
$region0: #{tpu_custom_call.1}
  #allocation0 [shape = 'u32[]', space=smem, size = 0x4, offset = 0x4, fixed_abs, tag = 'smem constant byte address 0x4 - core index']
  #allocation1 [shape = 'u32[72,128]{1,0:T(1,128)}', space=vmem, size = 0x9000, scoped, tag = 'internal scratch']
  %s0 = inlined_call_operand.hbm [shape: f32[2,4,1024], index: 0, kind: input, shape index: {}]
  %s1 = inlined_call_operand.vmem [shape: f32[4,1], index: 1, kind: input, shape index: {}]
  %s2 = inlined_call_operand.vmem [shape: f32[4,1], index: 2, kind: input, shape index: {}]
  %s3 = inlined_call_operand.vmem [shape: bf16[32,4], index: 3, kind: input, shape index: {}]
  %s4 = inlined_call_operand.hbm [shape: bf16[2,32,1024], index: 4, kind: output, shape index: {0}]
  %s5 = inlined_call_operand.vmem [shape: f32[2,1,32,1], index: 5, kind: output, shape index: {1}]
  %s6 = inlined_call_operand.vmem [shape: f32[2,1,32,1], index: 6, kind: output, shape index: {2}]
  %7 = xla_tuple %s4, %s5, %s6
  %s8 = sld [smem:[#allocation0]]
  $region69: #{tpu_custom_call.1} parent=0
    _
  %s10 = ssub.s32 1, %s8
  %s11 = scalar_select 0, %s10, %s8
  $region1: #{tpu_custom_call.1} parent=0
    #allocation2 [shape = 'u8[32768]{0}', space=vmem, size = 0x8000, scoped, tag = 'input window, operand 0']
    #allocation3 [shape = 's32[2]{0}', space=sflag, size = 0x8, scoped, tag = 'scoped memory for tpu_custom_call.1']
    #allocation4 [shape = 's32[2]{0}', space=sflag, size = 0x8, scoped, tag = 'scoped memory for tpu_custom_call.1']
    #allocation5 [shape = 'u8[131072]{0}', space=vmem, size = 0x20000, scoped, tag = 'output window, operand 0']
    %12 = vsyncpa [#allocation3], 0
    %s13 = scalar_lea.sflag [#allocation3], 1
    %14 = vsyncpa %s13, 0
    %15 = vsyncpa [#allocation4], 0
    %s16 = scalar_lea.sflag [#allocation4], 1
    %17 = vsyncpa %s16, 0
    loop: start=0, step=1, limit=4
    $region2: #{tpu_custom_call.1} parent=1 // loop_pre_header
      _
    $region3: #{tpu_custom_call.1} parent=1 // loop_header
      %s19 = sphi 0, %s23
      %p20 = scmp.ge.s32.totalorder %s19, 4
      %s26 = sphi 0, %s38
      %s27 = sphi 0, %s34
      %s28 = sphi 0, %s26
      %s29 = sphi 0, %s27
      %s30 = sphi 0, %s28
      %s31 = sphi 0, %s29
      %s43 = sphi 0, %s45
      %s46 = sphi 0, %s43
      %s47 = sphi 0, %s46
      %s63 = sphi 0, %s47
      %s67 = sphi 0, %s67
      %s69 = sphi 0, %s67
      %s70 = sphi 0, %s69
      %s84 = sphi 0, %s70
      %s88 = sphi 0, %s88
      %s90 = sphi 0, %s88
      %s91 = sphi 0, %s90
      %s105 = sphi 0, %s91
      %s109 = sphi 0, %s109
      %s111 = sphi 0, %s109
      %s112 = sphi 0, %s111
      %s126 = sphi 0, %s112
      %s134 = sphi 0, %s136
      %s137 = sphi 0, %s134
      %s138 = sphi 0, %s137
      %s154 = sphi 0, %s138
      %s162 = sphi 0, %s164
      %s165 = sphi 0, %s162
      %s166 = sphi 0, %s165
      %s182 = sphi 0, %s166
      %s190 = sphi 0, %s192
      %s193 = sphi 0, %s190
      %s194 = sphi 0, %s193
      %s210 = sphi 0, %s194
    $region4: #{tpu_custom_call.1} parent=1 // loop_header_branch
      %22 = sbr.rel (%p20) target = $region8
    $region5: #{tpu_custom_call.1} parent=1 // loop_body
      %s24 = ssub.s32 %s19, 1
      %s25 = ssub.s32 %s19, 2
      %s32 = sadd.s32 1, %s27
      %p33 = scmp.ge.s32.totalorder %s32, 1
      %s34 = scalar_select %p33, 0, %s32
      %s35 = sadd.s32 1, %s26
      %s36 = scalar_select %p33, %s35, %s26
      %p37 = scmp.ge.s32.totalorder %s36, 2
      %s38 = scalar_select %p37, 0, %s36
      %s39 = ssub.s32 %s26, %s38
      %s40 = ssub.s32 %s27, %s34
      %s41 = sor.u32 %s39, %s40
      %p42 = scmp.eq.s32.totalorder %s41, 0
      %s44 = sadd.s32 %s43, 1
      %s45 = scalar_select %p42, %s43, %s44
      %p48 = pneg %p42
      %p49 = scmp.eq.s32.totalorder %s19, 1
      %p50 = por %p48, %p49
      %p51 = scmp.ne.s32.totalorder %s43, %s46
      %p52 = scmp.eq.s32.totalorder %s19, 0
      %p53 = por %p51, %p52
      %p54 = scmp.ne.s32.totalorder %s43, %s46
      %p55 = scmp.eq.s32.totalorder %s24, 1
      %p56 = por %p54, %p55
      %p57 = scmp.ne.s32.totalorder %s46, %s47
      %p58 = scmp.eq.s32.totalorder %s24, 0
      %p59 = por %p57, %p58
      %p60 = scmp.ne.s32.totalorder %s46, %s47
      %p61 = scmp.eq.s32.totalorder %s25, 1
      %p62 = por %p60, %p61
      %p64 = scmp.ne.s32.totalorder %s47, %s63
      %p65 = scmp.eq.s32.totalorder %s25, 0
      %p66 = por %p64, %p65
      %s68 = sadd.s32 %s67, 1
      %p71 = scmp.eq.s32.totalorder %s19, 1
      %p72 = scmp.ne.s32.totalorder %s67, %s69
      %p73 = scmp.eq.s32.totalorder %s19, 0
      %p74 = por %p72, %p73
      %p75 = scmp.ne.s32.totalorder %s67, %s69
      %p76 = scmp.eq.s32.totalorder %s24, 1
      %p77 = por %p75, %p76
      %p78 = scmp.ne.s32.totalorder %s69, %s70
      %p79 = scmp.eq.s32.totalorder %s24, 0
      %p80 = por %p78, %p79
      %p81 = scmp.ne.s32.totalorder %s69, %s70
      %p82 = scmp.eq.s32.totalorder %s25, 1
      %p83 = por %p81, %p82
      %p85 = scmp.ne.s32.totalorder %s70, %s84
      %p86 = scmp.eq.s32.totalorder %s25, 0
      %p87 = por %p85, %p86
      %s89 = sadd.s32 %s88, 1
      %p92 = scmp.eq.s32.totalorder %s19, 1
      %p93 = scmp.ne.s32.totalorder %s88, %s90
      %p94 = scmp.eq.s32.totalorder %s19, 0
      %p95 = por %p93, %p94
      %p96 = scmp.ne.s32.totalorder %s88, %s90
      %p97 = scmp.eq.s32.totalorder %s24, 1
      %p98 = por %p96, %p97
      %p99 = scmp.ne.s32.totalorder %s90, %s91
      %p100 = scmp.eq.s32.totalorder %s24, 0
      %p101 = por %p99, %p100
      %p102 = scmp.ne.s32.totalorder %s90, %s91
      %p103 = scmp.eq.s32.totalorder %s25, 1
      %p104 = por %p102, %p103
      %p106 = scmp.ne.s32.totalorder %s91, %s105
      %p107 = scmp.eq.s32.totalorder %s25, 0
      %p108 = por %p106, %p107
      %s110 = sadd.s32 %s109, 1
      %p113 = scmp.eq.s32.totalorder %s19, 1
      %p114 = scmp.ne.s32.totalorder %s109, %s111
      %p115 = scmp.eq.s32.totalorder %s19, 0
      %p116 = por %p114, %p115
      %p117 = scmp.ne.s32.totalorder %s109, %s111
      %p118 = scmp.eq.s32.totalorder %s24, 1
      %p119 = por %p117, %p118
      %p120 = scmp.ne.s32.totalorder %s111, %s112
      %p121 = scmp.eq.s32.totalorder %s24, 0
      %p122 = por %p120, %p121
      %p123 = scmp.ne.s32.totalorder %s111, %s112
      %p124 = scmp.eq.s32.totalorder %s25, 1
      %p125 = por %p123, %p124
      %p127 = scmp.ne.s32.totalorder %s112, %s126
      %p128 = scmp.eq.s32.totalorder %s25, 0
      %p129 = por %p127, %p128
      %s130 = ssub.s32 %s26, %s38
      %s131 = ssub.s32 %s27, %s34
      %s132 = sor.u32 %s130, %s131
      %p133 = scmp.eq.s32.totalorder %s132, 0
      %s135 = sadd.s32 %s134, 1
      %s136 = scalar_select %p133, %s134, %s135
      %p139 = pneg %p133
      %p140 = scmp.eq.s32.totalorder %s19, 1
      %p141 = por %p139, %p140
      %p142 = scmp.ne.s32.totalorder %s134, %s137
      %p143 = scmp.eq.s32.totalorder %s19, 0
      %p144 = por %p142, %p143
      %p145 = scmp.ne.s32.totalorder %s134, %s137
      %p146 = scmp.eq.s32.totalorder %s24, 1
      %p147 = por %p145, %p146
      %p148 = scmp.ne.s32.totalorder %s137, %s138
      %p149 = scmp.eq.s32.totalorder %s24, 0
      %p150 = por %p148, %p149
      %p151 = scmp.ne.s32.totalorder %s137, %s138
      %p152 = scmp.eq.s32.totalorder %s25, 1
      %p153 = por %p151, %p152
      %p155 = scmp.ne.s32.totalorder %s138, %s154
      %p156 = scmp.eq.s32.totalorder %s25, 0
      %p157 = por %p155, %p156
      %s158 = ssub.s32 %s26, %s38
      %s159 = ssub.s32 %s27, %s34
      %s160 = sor.u32 %s158, %s159
      %p161 = scmp.eq.s32.totalorder %s160, 0
      %s163 = sadd.s32 %s162, 1
      %s164 = scalar_select %p161, %s162, %s163
      %p167 = pneg %p161
      %p168 = scmp.eq.s32.totalorder %s19, 1
      %p169 = por %p167, %p168
      %p170 = scmp.ne.s32.totalorder %s162, %s165
      %p171 = scmp.eq.s32.totalorder %s19, 0
      %p172 = por %p170, %p171
      %p173 = scmp.ne.s32.totalorder %s162, %s165
      %p174 = scmp.eq.s32.totalorder %s24, 1
      %p175 = por %p173, %p174
      %p176 = scmp.ne.s32.totalorder %s165, %s166
      %p177 = scmp.eq.s32.totalorder %s24, 0
      %p178 = por %p176, %p177
      %p179 = scmp.ne.s32.totalorder %s165, %s166
      %p180 = scmp.eq.s32.totalorder %s25, 1
      %p181 = por %p179, %p180
      %p183 = scmp.ne.s32.totalorder %s166, %s182
      %p184 = scmp.eq.s32.totalorder %s25, 0
      %p185 = por %p183, %p184
      %s186 = ssub.s32 %s26, %s38
      %s187 = ssub.s32 %s27, %s34
      %s188 = sor.u32 %s186, %s187
      %p189 = scmp.eq.s32.totalorder %s188, 0
      %s191 = sadd.s32 %s190, 1
      %s192 = scalar_select %p189, %s190, %s191
      %p195 = pneg %p189
      %p196 = scmp.eq.s32.totalorder %s19, 1
      %p197 = por %p195, %p196
      %p198 = scmp.ne.s32.totalorder %s190, %s193
      %p199 = scmp.eq.s32.totalorder %s19, 0
      %p200 = por %p198, %p199
      %p201 = scmp.ne.s32.totalorder %s190, %s193
      %p202 = scmp.eq.s32.totalorder %s24, 1
      %p203 = por %p201, %p202
      %p204 = scmp.ne.s32.totalorder %s193, %s194
      %p205 = scmp.eq.s32.totalorder %s24, 0
      %p206 = por %p204, %p205
      %p207 = scmp.ne.s32.totalorder %s193, %s194
      %p208 = scmp.eq.s32.totalorder %s25, 1
      %p209 = por %p207, %p208
      %p211 = scmp.ne.s32.totalorder %s194, %s210
      %p212 = scmp.eq.s32.totalorder %s25, 0
      %p213 = por %p211, %p212
      %p214 = scmp.le.s32.totalorder 1, %s19
      %p215 = scmp.lt.s32.totalorder %s19, 3
      %p216 = pnand %p214, %p215
      %p217 = pneg %p216
      // Predicated region
      $region9: #{tpu_custom_call.1} parent=5 // pred_check
        _
      $region10: #{tpu_custom_call.1} parent=5 // pred_check_branch
        %219 = sbr.rel (%p216) target = $region12
      $region11: #{tpu_custom_call.1} parent=5 // pred_region
        %s220 = ssub.s32 %s19, 1
        // Predicated region
        $region13: #{tpu_custom_call.1} parent=11 // pred_check
          %p221 = pneg %p80
        $region14: #{tpu_custom_call.1} parent=11 // pred_check_branch
          %223 = sbr.rel (%p221) target = $region16
        $region15: #{tpu_custom_call.1} parent=11 // pred_region
          _
        $region16: #{tpu_custom_call.1} parent=11 // pred_fallthru
          _
        // Predicated region
        $region17: #{tpu_custom_call.1} parent=11 // pred_check
          %p224 = pneg %p101
        $region18: #{tpu_custom_call.1} parent=11 // pred_check_branch
          %226 = sbr.rel (%p224) target = $region20
        $region19: #{tpu_custom_call.1} parent=11 // pred_region
          _
        $region20: #{tpu_custom_call.1} parent=11 // pred_fallthru
          _
        // Predicated region
        $region21: #{tpu_custom_call.1} parent=11 // pred_check
          %p227 = pneg %p122
        $region22: #{tpu_custom_call.1} parent=11 // pred_check_branch
          %229 = sbr.rel (%p227) target = $region24
        $region23: #{tpu_custom_call.1} parent=11 // pred_region
          _
        $region24: #{tpu_custom_call.1} parent=11 // pred_fallthru
          _
      $region12: #{tpu_custom_call.1} parent=5 // pred_fallthru
        _
      %p230 = scmp.lt.s32.totalorder %s19, 2
      // Predicated region
      $region25: #{tpu_custom_call.1} parent=5 // pred_check
        %p231 = pneg %p230
      $region26: #{tpu_custom_call.1} parent=5 // pred_check_branch
        %233 = sbr.rel (%p231) target = $region28
      $region27: #{tpu_custom_call.1} parent=5 // pred_region
        // Predicated region
        $region29: #{tpu_custom_call.1} parent=27 // pred_check
          %p234 = pneg %p53
        $region30: #{tpu_custom_call.1} parent=27 // pred_check_branch
          %236 = sbr.rel (%p234) target = $region32
        $region31: #{tpu_custom_call.1} parent=27 // pred_region
          %s237 = sand.u32 %s43, 1
          %s238 = scalar_lea.sflag [#allocation3], %s237
          %s239 = sand.u32 %s43, 1
          %s240 = smul.addr %s239, 32
          %s241 = scalar_lea.vmem [#allocation2], %s240
          %s242 = smul.u32 8, %s27
          %244 = vsyncadd %s238, 0
          %s245 = smul.addr %s26, 8
          %s246 = sadd.s32 %s242, %s245
          %s247 = smul.addr %s246, 4
          %s248 = scalar_lea.hbm %s0, %s247
          %s250 = sshll.u32 %s248, 4
          %s251 = int_to_ptr.hbm [resolvable:$true] %s250
          %s252 = sshll.u32 %s241, 4
          %s253 = int_to_ptr.vmem [resolvable:$true] %s252
          %255 = dma.hbm_to_vmem [thread:$0]  %s251, 512, %s253, %s238
        $region32: #{tpu_custom_call.1} parent=27 // pred_fallthru
          _
      $region28: #{tpu_custom_call.1} parent=5 // pred_fallthru
        _
      %p256 = scmp.le.s32.totalorder 1, %s19
      %p257 = scmp.lt.s32.totalorder %s19, 3
      %p258 = pnand %p256, %p257
      %p259 = pneg %p258
      // Predicated region
      $region33: #{tpu_custom_call.1} parent=5 // pred_check
        _
      $region34: #{tpu_custom_call.1} parent=5 // pred_check_branch
        %261 = sbr.rel (%p258) target = $region36
      $region35: #{tpu_custom_call.1} parent=5 // pred_region
        %s262 = ssub.s32 %s19, 1
        %s263 = sand.u32 %s46, 1
        %s264 = scalar_lea.sflag [#allocation3], %s263
        %s265 = sand.u32 %s46, 1
        %s266 = smul.addr %s265, 32
        %s267 = scalar_lea.vmem [#allocation2], %s266
        // Predicated region
        $region37: #{tpu_custom_call.1} parent=35 // pred_check
          %p268 = pneg %p59
        $region38: #{tpu_custom_call.1} parent=35 // pred_check_branch
          %270 = sbr.rel (%p268) target = $region40
        $region39: #{tpu_custom_call.1} parent=35 // pred_region
          %272 = dma.done %s264, 512
        $region40: #{tpu_custom_call.1} parent=35 // pred_fallthru
          _
        %s273 = sand.u32 %s46, 1
        %s274 = scalar_lea.sflag [#allocation3], %s273
        %s275 = sand.u32 %s46, 1
        %s276 = smul.addr %s275, 32
        %s277 = scalar_lea.vmem [#allocation2], %s276
        %p278 = pneg %p59
        %p279 = pneg %p56
        %p280 = pneg %p80
        %p281 = pneg %p77
        %p282 = pneg %p101
        %p283 = pneg %p98
        %p284 = pneg %p122
        %p285 = pneg %p119
        %p286 = pneg %p150
        %p287 = pneg %p147
        %s288 = sand.u32 %s137, 1
        %s289 = scalar_lea.sflag [#allocation4], %s288
        %s290 = sand.u32 %s137, 1
        %s291 = smul.addr %s290, 128
        %s292 = scalar_lea.vmem [#allocation5], %s291
        %p293 = pneg %p178
        %p294 = pneg %p175
        %p295 = scmp.lt.s32.totalorder %s28, 1
        %s296 = scalar_select %p295, %s28, 1
        %p297 = scmp.lt.s32.totalorder %s29, 0
        %s298 = scalar_select %p297, %s29, 0
        %s299 = smul.addr %s298, 4
        %s300 = smul.addr %s296, 4
        %s301 = sadd.s32 %s299, %s300
        %s302 = smul.addr %s301, 8
        %s303 = scalar_lea.vmem %s5, %s302
        %p304 = pneg %p206
        %p305 = pneg %p203
        %p306 = scmp.lt.s32.totalorder %s28, 1
        %s307 = scalar_select %p306, %s28, 1
        %p308 = scmp.lt.s32.totalorder %s29, 0
        %s309 = scalar_select %p308, %s29, 0
        %s310 = smul.addr %s309, 4
        %s311 = smul.addr %s307, 4
        %s312 = sadd.s32 %s310, %s311
        %s313 = smul.addr %s312, 8
        %s314 = scalar_lea.vmem %s6, %s313
        %s315 = smul.u32 8, %s29
        %s316 = smul.u32 8, %s29
        %p317 = scmp.lt.s32.totalorder %s28, 1
        %s318 = scalar_select %p317, %s28, 1
        %p319 = scmp.lt.s32.totalorder %s29, 0
        %s320 = scalar_select %p319, %s29, 0
        %s321 = smul.addr %s320, 4
        %s322 = smul.addr %s318, 4
        %s323 = sadd.s32 %s321, %s322
        %s324 = smul.addr %s323, 8
        %s325 = scalar_lea.vmem %s5, %s324
        %p326 = scmp.lt.s32.totalorder %s28, 1
        %s327 = scalar_select %p326, %s28, 1
        %p328 = scmp.lt.s32.totalorder %s29, 0
        %s329 = scalar_select %p328, %s29, 0
        %s330 = smul.addr %s329, 4
        %s331 = smul.addr %s327, 4
        %s332 = sadd.s32 %s330, %s331
        %s333 = smul.addr %s332, 8
        %s334 = scalar_lea.vmem %s6, %s333
        %v336 = vld [vmem:[%s267] sm:$0xff]
        %v337 = vld [vmem:[%s267 + $0x8] sm:$0xff]
        %v338 = vld [vmem:[%s267 + $0x10] sm:$0xff]
        %v339 = vld [vmem:[%s267 + $0x18] sm:$0xff]
        %v340 = vld [vmem:[%s1] sm:$0xf]
        %342 = vset.pattern.permute.xlu0 0
        %343 = vperm.xlu0 %342, %v340
        %v344 = vpop.permute.xlu0 %343
        %v346 = vunpack.c.l.s4 839922192
        %v347 = vunpack.c.0.s8 %v346
        %v348 = vperm.slane %v344, %v347
        %v350 = vmul.f32 %v336, %v348
        %v351 = vmul.f32 %v337, %v348
        %v352 = vmul.f32 %v338, %v348
        %v353 = vmul.f32 %v339, %v348
        %v354 = vld [vmem:[%s2] sm:$0xf]
        %356 = vset.pattern.permute.xlu0 0
        %357 = vperm.xlu0 %356, %v354
        %v358 = vpop.permute.xlu0 %357
        %v360 = vunpack.c.l.s4 839922192
        %v361 = vunpack.c.0.s8 %v360
        %v362 = vperm.slane %v358, %v361
        %v364 = vadd.f32 %v350, %v362
        %v365 = vadd.f32 %v351, %v362
        %v366 = vadd.f32 %v352, %v362
        %v367 = vadd.f32 %v353, %v362
        %v368 = vmax.f32 %v364, 0.0
        %v369 = vmax.f32 %v365, 0.0
        %v370 = vmax.f32 %v366, 0.0
        %v371 = vmax.f32 %v367, 0.0
        %v372 = vld [vmem:[%s3] sm:$0xf]
        %v373 = vld [vmem:[%s3 + $0x4] sm:$0xf]
        %v374 = vld [vmem:[%s3 + $0x8] sm:$0xf]
        %v375 = vld [vmem:[%s3 + $0xc] sm:$0xf]
        %380 = vst [vmem:[#allocation1] ss:$2 sm:$0xff] %v368
        %s381 = scalar_lea.vmem [#allocation1], 16
        %382 = vst [vmem:[%s381] ss:$2 sm:$0xff] %v369
        %s383 = scalar_lea.vmem [#allocation1], 32
        %384 = vst [vmem:[%s383] ss:$2 sm:$0xff] %v370
        %s385 = scalar_lea.vmem [#allocation1], 48
        %386 = vst [vmem:[%s385] ss:$2 sm:$0xff] %v371
        %v387 = vld.sshfl [vmem:[#allocation1] sm:$0xff pattern:$0x75316420]
        %v388 = vld.sshfl [vmem:[#allocation1 + $0x8] sm:$0xff pattern:$0x75316420]
        %v389 = vld.sshfl [vmem:[#allocation1 + $0x10] sm:$0xff pattern:$0x75316420]
        %v390 = vld.sshfl [vmem:[#allocation1 + $0x18] sm:$0xff pattern:$0x75316420]
        %v391 = vld.sshfl [vmem:[#allocation1 + $0x20] sm:$0xff pattern:$0x75316420]
        %v392 = vld.sshfl [vmem:[#allocation1 + $0x28] sm:$0xff pattern:$0x75316420]
        %v393 = vld.sshfl [vmem:[#allocation1 + $0x30] sm:$0xff pattern:$0x75316420]
        %v394 = vld.sshfl [vmem:[#allocation1 + $0x38] sm:$0xff pattern:$0x75316420]
        %v403 = vpack.c.bf16 %v387, %v387
        %v404 = vpack.c.bf16 %v388, %v388
        %v405 = vpack.c.bf16 %v389, %v389
        %v406 = vpack.c.bf16 %v390, %v390
        %v407 = vpack.c.bf16 %v391, %v391
        %v408 = vpack.c.bf16 %v392, %v392
        %v409 = vpack.c.bf16 %v393, %v393
        %v410 = vpack.c.bf16 %v394, %v394
        %v415 = vunpack.c.l.b16 %v372
        %v416 = vunpack.c.l.b16 %v373
        %v417 = vunpack.c.l.b16 %v374
        %v418 = vunpack.c.l.b16 %v375
        %v419 = vpack.c.b16 %v416, %v415
        %v420 = vpack.c.b16 %v418, %v417
        %vm421 = vcmask 31744
        %v423 = vsel %vm421, %v419, 0
        %v426 = vsel %vm421, %v420, 0
        %vm428 = vcmask 1041408
        %v430 = vsel %vm428, %v403, 0
        %v433 = vsel %vm428, %v404, 0
        %v436 = vsel %vm428, %v405, 0
        %v439 = vsel %vm428, %v406, 0
        %v442 = vsel %vm428, %v407, 0
        %v445 = vsel %vm428, %v408, 0
        %v448 = vsel %vm428, %v409, 0
        %v451 = vsel %vm428, %v410, 0
        %453 = vmatpush.bf16.msra.mxu0 0
        %454 = vmatpush.bf16.msra.mxu0 0
        %455 = vmatpush.bf16.msra.mxu0 0
        %456 = vmatpush.bf16.msra.mxu0 0
        %457 = vmatpush.bf16.msra.mxu0 0
        %458 = vmatpush.bf16.msra.mxu0 0
        %459 = vmatpush.bf16.msra.mxu0 0
        %460 = vmatpush.bf16.msra.mxu0 %v430
        %461 = vmatmul.bf16.gmra.mxu0 %v423
        %v462 = vpop.f32.mrf.mxu0
        %v463 = vadd.f32 0.0, %v462
        %v464 = vpop.f32.mrf.mxu0
        %v465 = vadd.f32 0.0, %v464
        %466 = vmatmul.bf16.gmra.mxu0 %v426
        %v467 = vpop.f32.mrf.mxu0
        %v468 = vadd.f32 0.0, %v467
        %v469 = vpop.f32.mrf.mxu0
        %v470 = vadd.f32 0.0, %v469
        %471 = vdwg.mxu0
        %472 = vmatpush.bf16.msra.mxu0 0
        %473 = vmatpush.bf16.msra.mxu0 0
        %474 = vmatpush.bf16.msra.mxu0 0
        %475 = vmatpush.bf16.msra.mxu0 0
        %476 = vmatpush.bf16.msra.mxu0 0
        %477 = vmatpush.bf16.msra.mxu0 0
        %478 = vmatpush.bf16.msra.mxu0 0
        %479 = vmatpush.bf16.msra.mxu0 %v433
        %480 = vmatmul.bf16.gmra.mxu0 %v423
        %v481 = vpop.f32.mrf.mxu0
        %v482 = vadd.f32 0.0, %v481
        %v483 = vpop.f32.mrf.mxu0
        %v484 = vadd.f32 0.0, %v483
        %485 = vmatmul.bf16.gmra.mxu0 %v426
        %v486 = vpop.f32.mrf.mxu0
        %v487 = vadd.f32 0.0, %v486
        %v488 = vpop.f32.mrf.mxu0
        %v489 = vadd.f32 0.0, %v488
        %490 = vdwg.mxu0
        %491 = vmatpush.bf16.msra.mxu0 0
        %492 = vmatpush.bf16.msra.mxu0 0
        %493 = vmatpush.bf16.msra.mxu0 0
        %494 = vmatpush.bf16.msra.mxu0 0
        %495 = vmatpush.bf16.msra.mxu0 0
        %496 = vmatpush.bf16.msra.mxu0 0
        %497 = vmatpush.bf16.msra.mxu0 0
        %498 = vmatpush.bf16.msra.mxu0 %v436
        %499 = vmatmul.bf16.gmra.mxu0 %v423
        %v500 = vpop.f32.mrf.mxu0
        %v501 = vadd.f32 0.0, %v500
        %v502 = vpop.f32.mrf.mxu0
        %v503 = vadd.f32 0.0, %v502
        %504 = vmatmul.bf16.gmra.mxu0 %v426
        %v505 = vpop.f32.mrf.mxu0
        %v506 = vadd.f32 0.0, %v505
        %v507 = vpop.f32.mrf.mxu0
        %v508 = vadd.f32 0.0, %v507
        %509 = vdwg.mxu0
        %510 = vmatpush.bf16.msra.mxu0 0
        %511 = vmatpush.bf16.msra.mxu0 0
        %512 = vmatpush.bf16.msra.mxu0 0
        %513 = vmatpush.bf16.msra.mxu0 0
        %514 = vmatpush.bf16.msra.mxu0 0
        %515 = vmatpush.bf16.msra.mxu0 0
        %516 = vmatpush.bf16.msra.mxu0 0
        %517 = vmatpush.bf16.msra.mxu0 %v439
        %518 = vmatmul.bf16.gmra.mxu0 %v423
        %v519 = vpop.f32.mrf.mxu0
        %v520 = vadd.f32 0.0, %v519
        %v521 = vpop.f32.mrf.mxu0
        %v522 = vadd.f32 0.0, %v521
        %523 = vmatmul.bf16.gmra.mxu0 %v426
        %v524 = vpop.f32.mrf.mxu0
        %v525 = vadd.f32 0.0, %v524
        %v526 = vpop.f32.mrf.mxu0
        %v527 = vadd.f32 0.0, %v526
        %528 = vdwg.mxu0
        %529 = vmatpush.bf16.msra.mxu0 0
        %530 = vmatpush.bf16.msra.mxu0 0
        %531 = vmatpush.bf16.msra.mxu0 0
        %532 = vmatpush.bf16.msra.mxu0 0
        %533 = vmatpush.bf16.msra.mxu0 0
        %534 = vmatpush.bf16.msra.mxu0 0
        %535 = vmatpush.bf16.msra.mxu0 0
        %536 = vmatpush.bf16.msra.mxu0 %v442
        %537 = vmatmul.bf16.gmra.mxu0 %v423
        %v538 = vpop.f32.mrf.mxu0
        %v539 = vadd.f32 0.0, %v538
        %v540 = vpop.f32.mrf.mxu0
        %v541 = vadd.f32 0.0, %v540
        %542 = vmatmul.bf16.gmra.mxu0 %v426
        %v543 = vpop.f32.mrf.mxu0
        %v544 = vadd.f32 0.0, %v543
        %v545 = vpop.f32.mrf.mxu0
        %v546 = vadd.f32 0.0, %v545
        %547 = vdwg.mxu0
        %548 = vmatpush.bf16.msra.mxu0 0
        %549 = vmatpush.bf16.msra.mxu0 0
        %550 = vmatpush.bf16.msra.mxu0 0
        %551 = vmatpush.bf16.msra.mxu0 0
        %552 = vmatpush.bf16.msra.mxu0 0
        %553 = vmatpush.bf16.msra.mxu0 0
        %554 = vmatpush.bf16.msra.mxu0 0
        %555 = vmatpush.bf16.msra.mxu0 %v445
        %556 = vmatmul.bf16.gmra.mxu0 %v423
        %v557 = vpop.f32.mrf.mxu0
        %v558 = vadd.f32 0.0, %v557
        %v559 = vpop.f32.mrf.mxu0
        %v560 = vadd.f32 0.0, %v559
        %561 = vmatmul.bf16.gmra.mxu0 %v426
        %v562 = vpop.f32.mrf.mxu0
        %v563 = vadd.f32 0.0, %v562
        %v564 = vpop.f32.mrf.mxu0
        %v565 = vadd.f32 0.0, %v564
        %566 = vdwg.mxu0
        %567 = vmatpush.bf16.msra.mxu0 0
        %568 = vmatpush.bf16.msra.mxu0 0
        %569 = vmatpush.bf16.msra.mxu0 0
        %570 = vmatpush.bf16.msra.mxu0 0
        %571 = vmatpush.bf16.msra.mxu0 0
        %572 = vmatpush.bf16.msra.mxu0 0
        %573 = vmatpush.bf16.msra.mxu0 0
        %574 = vmatpush.bf16.msra.mxu0 %v448
        %575 = vmatmul.bf16.gmra.mxu0 %v423
        %v576 = vpop.f32.mrf.mxu0
        %v577 = vadd.f32 0.0, %v576
        %v578 = vpop.f32.mrf.mxu0
        %v579 = vadd.f32 0.0, %v578
        %580 = vmatmul.bf16.gmra.mxu0 %v426
        %v581 = vpop.f32.mrf.mxu0
        %v582 = vadd.f32 0.0, %v581
        %v583 = vpop.f32.mrf.mxu0
        %v584 = vadd.f32 0.0, %v583
        %585 = vdwg.mxu0
        %586 = vmatpush.bf16.msra.mxu0 0
        %587 = vmatpush.bf16.msra.mxu0 0
        %588 = vmatpush.bf16.msra.mxu0 0
        %589 = vmatpush.bf16.msra.mxu0 0
        %590 = vmatpush.bf16.msra.mxu0 0
        %591 = vmatpush.bf16.msra.mxu0 0
        %592 = vmatpush.bf16.msra.mxu0 0
        %593 = vmatpush.bf16.msra.mxu0 %v451
        %594 = vmatmul.bf16.gmra.mxu0 %v423
        %v595 = vpop.f32.mrf.mxu0
        %v596 = vadd.f32 0.0, %v595
        %v597 = vpop.f32.mrf.mxu0
        %v598 = vadd.f32 0.0, %v597
        %599 = vmatmul.bf16.gmra.mxu0 %v426
        %v600 = vpop.f32.mrf.mxu0
        %v601 = vadd.f32 0.0, %v600
        %v602 = vpop.f32.mrf.mxu0
        %v603 = vadd.f32 0.0, %v602
        %604 = vdwg.mxu0
        %v605 = vpack.c.bf16 %v482, %v463
        %v606 = vpack.c.bf16 %v520, %v501
        %v607 = vpack.c.bf16 %v558, %v539
        %v608 = vpack.c.bf16 %v596, %v577
        %v609 = vpack.c.bf16 %v484, %v465
        %v610 = vpack.c.bf16 %v522, %v503
        %v611 = vpack.c.bf16 %v560, %v541
        %v612 = vpack.c.bf16 %v598, %v579
        %v613 = vpack.c.bf16 %v487, %v468
        %v614 = vpack.c.bf16 %v525, %v506
        %v615 = vpack.c.bf16 %v563, %v544
        %v616 = vpack.c.bf16 %v601, %v582
        %v617 = vpack.c.bf16 %v489, %v470
        %v618 = vpack.c.bf16 %v527, %v508
        %v619 = vpack.c.bf16 %v565, %v546
        %v620 = vpack.c.bf16 %v603, %v584
        %621 = vst [vmem:[%s292] sm:$0xff] %v605
        %622 = vst [vmem:[%s292 + $0x8] sm:$0xff] %v606
        %623 = vst [vmem:[%s292 + $0x10] sm:$0xff] %v607
        %624 = vst [vmem:[%s292 + $0x18] sm:$0xff] %v608
        %625 = vst [vmem:[%s292 + $0x20] sm:$0xff] %v609
        %626 = vst [vmem:[%s292 + $0x28] sm:$0xff] %v610
        %627 = vst [vmem:[%s292 + $0x30] sm:$0xff] %v611
        %628 = vst [vmem:[%s292 + $0x38] sm:$0xff] %v612
        %629 = vst [vmem:[%s292 + $0x40] sm:$0xff] %v613
        %630 = vst [vmem:[%s292 + $0x48] sm:$0xff] %v614
        %631 = vst [vmem:[%s292 + $0x50] sm:$0xff] %v615
        %632 = vst [vmem:[%s292 + $0x58] sm:$0xff] %v616
        %633 = vst [vmem:[%s292 + $0x60] sm:$0xff] %v617
        %634 = vst [vmem:[%s292 + $0x68] sm:$0xff] %v618
        %635 = vst [vmem:[%s292 + $0x70] sm:$0xff] %v619
        %636 = vst [vmem:[%s292 + $0x78] sm:$0xff] %v620
        %v637 = vadd.f32 %v463, %v482
        %v638 = vadd.f32 %v637, %v501
        %v639 = vadd.f32 %v638, %v520
        %v640 = vadd.f32 %v639, %v539
        %v641 = vadd.f32 %v640, %v558
        %v642 = vadd.f32 %v641, %v577
        %v643 = vadd.f32 %v642, %v596
        %644 = vadd.xlane.f32.xlu0 %v643
        %v645 = vpop.xlane.xlu0 %644
        %v646 = vadd.f32 %v465, %v484
        %v647 = vadd.f32 %v646, %v503
        %v648 = vadd.f32 %v647, %v522
        %v649 = vadd.f32 %v648, %v541
        %v650 = vadd.f32 %v649, %v560
        %v651 = vadd.f32 %v650, %v579
        %v652 = vadd.f32 %v651, %v598
        %653 = vadd.xlane.f32.xlu0 %v652
        %v654 = vpop.xlane.xlu0 %653
        %v655 = vadd.f32 %v468, %v487
        %v656 = vadd.f32 %v655, %v506
        %v657 = vadd.f32 %v656, %v525
        %v658 = vadd.f32 %v657, %v544
        %v659 = vadd.f32 %v658, %v563
        %v660 = vadd.f32 %v659, %v582
        %v661 = vadd.f32 %v660, %v601
        %662 = vadd.xlane.f32.xlu0 %v661
        %v663 = vpop.xlane.xlu0 %662
        %v664 = vadd.f32 %v470, %v489
        %v665 = vadd.f32 %v664, %v508
        %v666 = vadd.f32 %v665, %v527
        %v667 = vadd.f32 %v666, %v546
        %v668 = vadd.f32 %v667, %v565
        %v669 = vadd.f32 %v668, %v584
        %v670 = vadd.f32 %v669, %v603
        %671 = vadd.xlane.f32.xlu0 %v670
        %v672 = vpop.xlane.xlu0 %671
        %vm673 = vcmask 7168
        %674 = vst.msk [vmem:[%s325] sm:$0xff] %vm673, %v645
        %675 = vst.msk [vmem:[%s325 + $0x8] sm:$0xff] %vm673, %v654
        %676 = vst.msk [vmem:[%s325 + $0x10] sm:$0xff] %vm673, %v663
        %677 = vst.msk [vmem:[%s325 + $0x18] sm:$0xff] %vm673, %v672
        %v678 = vmul.f32 %v463, %v463
        %v679 = vmul.f32 %v482, %v482
        %v680 = vmul.f32 %v501, %v501
        %v681 = vmul.f32 %v520, %v520
        %v682 = vmul.f32 %v539, %v539
        %v683 = vmul.f32 %v558, %v558
        %v684 = vmul.f32 %v577, %v577
        %v685 = vmul.f32 %v596, %v596
        %v686 = vmul.f32 %v465, %v465
        %v687 = vmul.f32 %v484, %v484
        %v688 = vmul.f32 %v503, %v503
        %v689 = vmul.f32 %v522, %v522
        %v690 = vmul.f32 %v541, %v541
        %v691 = vmul.f32 %v560, %v560
        %v692 = vmul.f32 %v579, %v579
        %v693 = vmul.f32 %v598, %v598
        %v694 = vmul.f32 %v468, %v468
        %v695 = vmul.f32 %v487, %v487
        %v696 = vmul.f32 %v506, %v506
        %v697 = vmul.f32 %v525, %v525
        %v698 = vmul.f32 %v544, %v544
        %v699 = vmul.f32 %v563, %v563
        %v700 = vmul.f32 %v582, %v582
        %v701 = vmul.f32 %v601, %v601
        %v702 = vmul.f32 %v470, %v470
        %v703 = vmul.f32 %v489, %v489
        %v704 = vmul.f32 %v508, %v508
        %v705 = vmul.f32 %v527, %v527
        %v706 = vmul.f32 %v546, %v546
        %v707 = vmul.f32 %v565, %v565
        %v708 = vmul.f32 %v584, %v584
        %v709 = vmul.f32 %v603, %v603
        %v710 = vadd.f32 %v678, %v679
        %v711 = vadd.f32 %v710, %v680
        %v712 = vadd.f32 %v711, %v681
        %v713 = vadd.f32 %v712, %v682
        %v714 = vadd.f32 %v713, %v683
        %v715 = vadd.f32 %v714, %v684
        %v716 = vadd.f32 %v715, %v685
        %717 = vadd.xlane.f32.xlu0 %v716
        %v718 = vpop.xlane.xlu0 %717
        %v719 = vadd.f32 %v686, %v687
        %v720 = vadd.f32 %v719, %v688
        %v721 = vadd.f32 %v720, %v689
        %v722 = vadd.f32 %v721, %v690
        %v723 = vadd.f32 %v722, %v691
        %v724 = vadd.f32 %v723, %v692
        %v725 = vadd.f32 %v724, %v693
        %726 = vadd.xlane.f32.xlu0 %v725
        %v727 = vpop.xlane.xlu0 %726
        %v728 = vadd.f32 %v694, %v695
        %v729 = vadd.f32 %v728, %v696
        %v730 = vadd.f32 %v729, %v697
        %v731 = vadd.f32 %v730, %v698
        %v732 = vadd.f32 %v731, %v699
        %v733 = vadd.f32 %v732, %v700
        %v734 = vadd.f32 %v733, %v701
        %735 = vadd.xlane.f32.xlu0 %v734
        %v736 = vpop.xlane.xlu0 %735
        %v737 = vadd.f32 %v702, %v703
        %v738 = vadd.f32 %v737, %v704
        %v739 = vadd.f32 %v738, %v705
        %v740 = vadd.f32 %v739, %v706
        %v741 = vadd.f32 %v740, %v707
        %v742 = vadd.f32 %v741, %v708
        %v743 = vadd.f32 %v742, %v709
        %744 = vadd.xlane.f32.xlu0 %v743
        %v745 = vpop.xlane.xlu0 %744
        %746 = vst.msk [vmem:[%s334] sm:$0xff] %vm673, %v718
        %747 = vst.msk [vmem:[%s334 + $0x8] sm:$0xff] %vm673, %v727
        %748 = vst.msk [vmem:[%s334 + $0x10] sm:$0xff] %vm673, %v736
        %749 = vst.msk [vmem:[%s334 + $0x18] sm:$0xff] %vm673, %v745
        %s750 = sand.u32 %s137, 1
        %s751 = scalar_lea.sflag [#allocation4], %s750
        %s752 = sand.u32 %s137, 1
        %s753 = smul.addr %s752, 128
        %s754 = scalar_lea.vmem [#allocation5], %s753
        %p755 = scmp.lt.s32.totalorder %s28, 1
        %s756 = scalar_select %p755, %s28, 1
        %p757 = scmp.lt.s32.totalorder %s29, 0
        %s758 = scalar_select %p757, %s29, 0
        %s759 = smul.addr %s758, 4
        %s760 = smul.addr %s756, 4
        %s761 = sadd.s32 %s759, %s760
        %s762 = smul.addr %s761, 8
        %s763 = scalar_lea.vmem %s5, %s762
        %p764 = scmp.lt.s32.totalorder %s28, 1
        %s765 = scalar_select %p764, %s28, 1
        %p766 = scmp.lt.s32.totalorder %s29, 0
        %s767 = scalar_select %p766, %s29, 0
        %s768 = smul.addr %s767, 4
        %s769 = smul.addr %s765, 4
        %s770 = sadd.s32 %s768, %s769
        %s771 = smul.addr %s770, 8
        %s772 = scalar_lea.vmem %s6, %s771
        // Predicated region
        $region41: #{tpu_custom_call.1} parent=35 // pred_check
          %p773 = pneg %p147
        $region42: #{tpu_custom_call.1} parent=35 // pred_check_branch
          %775 = sbr.rel (%p773) target = $region44
        $region43: #{tpu_custom_call.1} parent=35 // pred_region
          %s776 = smul.u32 8, %s29
          %778 = vsyncadd %s751, 0
          %s779 = smul.addr %s28, 32
          %s780 = sadd.s32 %s776, %s779
          %s781 = smul.addr %s780, 4
          %s782 = scalar_lea.hbm %s4, %s781
          %s783 = sshll.u32 %s754, 4
          %s784 = int_to_ptr.vmem [resolvable:$true] %s783
          %s785 = sshll.u32 %s782, 4
          %s786 = int_to_ptr.hbm [resolvable:$true] %s785
          %791 = dma.vmem_to_hbm [thread:$0]  %s784, 2048, %s786, %s751, 512, 512, 32
        $region44: #{tpu_custom_call.1} parent=35 // pred_fallthru
          _
        // Predicated region
        $region45: #{tpu_custom_call.1} parent=35 // pred_check
          %p792 = pneg %p175
        $region46: #{tpu_custom_call.1} parent=35 // pred_check_branch
          %794 = sbr.rel (%p792) target = $region48
        $region47: #{tpu_custom_call.1} parent=35 // pred_region
          _
        $region48: #{tpu_custom_call.1} parent=35 // pred_fallthru
          _
        // Predicated region
        $region49: #{tpu_custom_call.1} parent=35 // pred_check
          %p795 = pneg %p203
        $region50: #{tpu_custom_call.1} parent=35 // pred_check_branch
          %797 = sbr.rel (%p795) target = $region52
        $region51: #{tpu_custom_call.1} parent=35 // pred_region
          _
        $region52: #{tpu_custom_call.1} parent=35 // pred_fallthru
          _
      $region36: #{tpu_custom_call.1} parent=5 // pred_fallthru
        _
      %p798 = scmp.le.s32.totalorder 2, %s19
      // Predicated region
      $region53: #{tpu_custom_call.1} parent=5 // pred_check
        %p799 = pneg %p798
      $region54: #{tpu_custom_call.1} parent=5 // pred_check_branch
        %801 = sbr.rel (%p799) target = $region56
      $region55: #{tpu_custom_call.1} parent=5 // pred_region
        %s802 = ssub.s32 %s19, 2
        // Predicated region
        $region57: #{tpu_custom_call.1} parent=55 // pred_check
          %p803 = pneg %p153
        $region58: #{tpu_custom_call.1} parent=55 // pred_check_branch
          %805 = sbr.rel (%p803) target = $region60
        $region59: #{tpu_custom_call.1} parent=55 // pred_region
          %s806 = sand.u32 %s138, 1
          %s807 = scalar_lea.sflag [#allocation4], %s806
          %s808 = sand.u32 %s138, 1
          %s809 = smul.addr %s808, 128
          %s810 = scalar_lea.vmem [#allocation5], %s809
          %812 = dma.done %s807, 2048
        $region60: #{tpu_custom_call.1} parent=55 // pred_fallthru
          _
        // Predicated region
        $region61: #{tpu_custom_call.1} parent=55 // pred_check
          %p813 = pneg %p181
        $region62: #{tpu_custom_call.1} parent=55 // pred_check_branch
          %815 = sbr.rel (%p813) target = $region64
        $region63: #{tpu_custom_call.1} parent=55 // pred_region
          %p816 = scmp.lt.s32.totalorder %s30, 1
          %s817 = scalar_select %p816, %s30, 1
          %p818 = scmp.lt.s32.totalorder %s31, 0
          %s819 = scalar_select %p818, %s31, 0
          %s820 = smul.addr %s819, 4
          %s821 = smul.addr %s817, 4
          %s822 = sadd.s32 %s820, %s821
          %s823 = smul.addr %s822, 8
          %s824 = scalar_lea.vmem %s5, %s823
        $region64: #{tpu_custom_call.1} parent=55 // pred_fallthru
          _
        // Predicated region
        $region65: #{tpu_custom_call.1} parent=55 // pred_check
          %p825 = pneg %p209
        $region66: #{tpu_custom_call.1} parent=55 // pred_check_branch
          %827 = sbr.rel (%p825) target = $region68
        $region67: #{tpu_custom_call.1} parent=55 // pred_region
          %p828 = scmp.lt.s32.totalorder %s30, 1
          %s829 = scalar_select %p828, %s30, 1
          %p830 = scmp.lt.s32.totalorder %s31, 0
          %s831 = scalar_select %p830, %s31, 0
          %s832 = smul.addr %s831, 4
          %s833 = smul.addr %s829, 4
          %s834 = sadd.s32 %s832, %s833
          %s835 = smul.addr %s834, 8
          %s836 = scalar_lea.vmem %s6, %s835
        $region68: #{tpu_custom_call.1} parent=55 // pred_fallthru
          _
      $region56: #{tpu_custom_call.1} parent=5 // pred_fallthru
        _
    $region6: #{tpu_custom_call.1} parent=1 // loop_footer
      %s23 = sadd.s32 1, %s19
    $region7: #{tpu_custom_call.1} parent=1 // loop_footer_branch
      %18 = sbr.rel target = $region3
    $region8: #{tpu_custom_call.1} parent=1 // loop_exit
      _
    %837 = vsyncpa [#allocation3], 1
    %s838 = scalar_lea.sflag [#allocation3], 1
    %839 = vsyncpa %s838, 1
    %840 = vsyncpa [#allocation4], 1
    %s841 = scalar_lea.sflag [#allocation4], 1
    %842 = vsyncpa %s841, 1

</llo_original>
